<compile_context>
chip_gen: v7x
topology: tpu7x:2x2x1
jax: 0.10.0
libtpu: 0.0.40
codegen_flags: <defaults>
</compile_context>

<pallas_src>
import math
import jax
import jax.numpy as jnp
from jax import lax
from jax.experimental import pallas as pl
from jax.experimental.pallas import tpu as pltpu


# ---------------------------------------------------------------------------
# helpers
# ---------------------------------------------------------------------------
def _round_up(x, m):
    return ((x + m - 1) // m) * m


def _fit_tile(dim, target, align):
    """Largest tile <= target that divides dim (align-multiple when possible)."""
    if dim <= target:
        return dim
    t = (target // align) * align
    while t >= align:
        if dim % t == 0:
            return t
        t -= align
    return dim  # fall back: one un-tiled block along this axis


_VMEM_LIMIT = None


def _vmem_limit_bytes():
    """Per-generation VMEM cap with ~25% headroom (v7x: ~48 MiB, v5e/v6e: ~96 MiB)."""
    global _VMEM_LIMIT
    if _VMEM_LIMIT is None:
        cap = 128 * 1024 * 1024
        try:
            info = pltpu.get_tpu_info()
            cap = int(getattr(info, "vmem_capacity_bytes", cap) or cap)
        except Exception:
            pass
        _VMEM_LIMIT = min((cap * 3) // 4, 100 * 1024 * 1024)
    return _VMEM_LIMIT


# ---------------------------------------------------------------------------
# Tiled linear:  y = x @ Wt + b     (Wt pre-transposed bf16, shape (K, N))
# ---------------------------------------------------------------------------
def _linear_kernel_acc(x_ref, wt_ref, b_ref, o_ref, acc_ref):
    """bf16 output path: f32 VMEM accumulator, cast on the last K step."""
    k = pl.program_id(2)

    @pl.when(k == 0)
    def _():
        acc_ref[...] = jnp.zeros(acc_ref.shape, jnp.float32)

    x = x_ref[...]
    if x.dtype != jnp.bfloat16:        # trace-time check; no-op for bf16 inputs
        x = x.astype(jnp.bfloat16)
    w = wt_ref[...]
    if w.dtype != jnp.bfloat16:        # weights are stored bf16 -> no cast emitted
        w = w.astype(jnp.bfloat16)
    acc_ref[...] += jnp.dot(x, w, preferred_element_type=jnp.float32)

    @pl.when(k == pl.num_programs(2) - 1)
    def _():
        o_ref[...] = (acc_ref[...] + b_ref[...]).astype(o_ref.dtype)


def _linear_kernel_inplace(x_ref, wt_ref, b_ref, o_ref):
    """f32 output path: accumulate directly into o_ref (resident across K)."""
    k = pl.program_id(2)

    @pl.when(k == 0)
    def _():
        o_ref[...] = jnp.zeros(o_ref.shape, jnp.float32)

    x = x_ref[...]
    if x.dtype != jnp.bfloat16:
        x = x.astype(jnp.bfloat16)
    w = wt_ref[...]
    if w.dtype != jnp.bfloat16:
        w = w.astype(jnp.bfloat16)
    o_ref[...] += jnp.dot(x, w, preferred_element_type=jnp.float32)

    @pl.when(k == pl.num_programs(2) - 1)
    def _():
        o_ref[...] = o_ref[...] + b_ref[...]


def pallas_linear(x, wt, b, out_dtype=jnp.bfloat16, *, tm=256, tn=512, tk=512):
    """x: (M, K), wt: (K, N) pre-transposed bf16 weight, b: (N,) f32."""
    M, K = x.shape
    K2, N = wt.shape
    assert K == K2 and b.shape == (N,)

    # Row tile: pad M up to a multiple of the tile instead of one giant block.
    tm = min(tm, _round_up(M, 8))
    Mp = _round_up(M, tm)
    if Mp != M:
        x = jnp.pad(x, ((0, Mp - M), (0, 0)))
    tn = _fit_tile(N, tn, 128)
    tk = _fit_tile(K, tk, 128)
    grid = (Mp // tm, N // tn, K // tk)

    f32_out = out_dtype == jnp.float32
    kernel = _linear_kernel_inplace if f32_out else _linear_kernel_acc
    scratch = [] if f32_out else [pltpu.VMEM((tm, tn), jnp.float32)]

    y = pl.pallas_call(
        kernel,
        out_shape=jax.ShapeDtypeStruct((Mp, N), out_dtype),
        grid_spec=pltpu.PrefetchScalarGridSpec(
            num_scalar_prefetch=0,
            grid=grid,
            in_specs=[
                pl.BlockSpec((tm, tk), lambda i, j, k: (i, k)),
                pl.BlockSpec((tk, tn), lambda i, j, k: (k, j)),
                pl.BlockSpec((1, tn), lambda i, j, k: (0, j)),
            ],
            out_specs=pl.BlockSpec((tm, tn), lambda i, j, k: (i, j)),
            scratch_shapes=scratch,
        ),
        compiler_params=pltpu.CompilerParams(
            dimension_semantics=("parallel", "parallel", "arbitrary"),
            vmem_limit_bytes=_vmem_limit_bytes(),
        ),
    )(x, wt, b.reshape(1, N).astype(jnp.float32))
    return y if Mp == M else y[:M]


# ---------------------------------------------------------------------------
# Flash-style attention: grid (B, n_q, n_kv), online softmax, heads via lanes
# ---------------------------------------------------------------------------
def _make_attn_kernel(h, d_k, offs, has_bias):
    q_off, k_off, v_off = offs

    def _step(q_ref, k_ref, v_ref, bias, o_ref, m_sc, l_sc, acc_sc):
        ki = pl.program_id(2)

        @pl.when(ki == 0)
        def _():
            m_sc[...] = jnp.full(m_sc.shape, -jnp.inf, dtype=jnp.float32)
            l_sc[...] = jnp.zeros(l_sc.shape, jnp.float32)
            acc_sc[...] = jnp.zeros(acc_sc.shape, jnp.float32)

        # Static unroll over heads; each head's temporaries retire into its own
        # VMEM scratch slice so live ranges stay bounded per iteration.
        # TODO(synk): for large h use a head grid axis (dynamic lane slices of
        # width d_k < 128 do not lower cleanly, so fori_loop is not used here).
        for head in range(h):
            qh = q_ref[0, :, pl.ds(q_off + head * d_k, d_k)]   # bf16 (tq, d_k)
            kh = k_ref[0, :, pl.ds(k_off + head * d_k, d_k)]   # bf16 (tkv, d_k)
            vh = v_ref[0, :, pl.ds(v_off + head * d_k, d_k)]   # bf16 (tkv, d_k)
            # scores = qh @ kh^T without a transpose op; 1/sqrt(d_k) is already
            # folded into the Q projection weights.
            s = lax.dot_general(qh, kh, (((1,), (1,)), ((), ())),
                                preferred_element_type=jnp.float32)  # (tq, tkv)
            if bias is not None:
                s = s + bias
            m_prev = m_sc[head]                                   # (tq, 1)
            m_new = jnp.maximum(m_prev, jnp.max(s, axis=-1, keepdims=True))
            alpha = jnp.exp(m_prev - m_new)
            p = jnp.exp(s - m_new)
            l_sc[head] = alpha * l_sc[head] + jnp.sum(p, axis=-1, keepdims=True)
            m_sc[head] = m_new
            csl = pl.ds(head * d_k, d_k)
            acc_sc[:, csl] = alpha * acc_sc[:, csl] + jnp.dot(
                p.astype(jnp.bfloat16), vh, preferred_element_type=jnp.float32)

        @pl.when(ki == pl.num_programs(2) - 1)
        def _():
            # Normalize each head inside VMEM scratch, then a single lane-dense
            # (tq, D) store to the HBM output block (no per-head masked stores).
            for head in range(h):
                csl = pl.ds(head * d_k, d_k)
                inv_l = pl.reciprocal(l_sc[head], approx=True)
                acc_sc[:, csl] = acc_sc[:, csl] * inv_l
            o_ref[0, :, :] = acc_sc[...].astype(o_ref.dtype)

    if has_bias:
        def kernel(q_ref, k_ref, v_ref, bias_ref, o_ref, m_sc, l_sc, acc_sc):
            # Under flash tiling the hoisted f32 bias is only (tq, tkv), bounded
            # by the tile rather than by S^2.
            bias = bias_ref[0, :, :].astype(jnp.float32)
            _step(q_ref, k_ref, v_ref, bias, o_ref, m_sc, l_sc, acc_sc)
    else:
        def kernel(q_ref, k_ref, v_ref, o_ref, m_sc, l_sc, acc_sc):
            _step(q_ref, k_ref, v_ref, None, o_ref, m_sc, l_sc, acc_sc)
    return kernel


def _run_attention(tensors, specs, offs, bias, h, d_k, D, B, Sq, Skv, tq, tkv):
    has_bias = bias is not None
    in_specs = list(specs)
    inputs = list(tensors)
    if has_bias:
        if bias.shape[0] == 1:
            # batch-invariant mask: reuse block 0 for every batch step
            in_specs.append(pl.BlockSpec((1, tq, tkv), lambda b, qi, ki: (0, qi, ki)))
        else:
            in_specs.append(pl.BlockSpec((1, tq, tkv), lambda b, qi, ki: (b, qi, ki)))
        inputs.append(bias)

    return pl.pallas_call(
        _make_attn_kernel(h, d_k, offs, has_bias),
        out_shape=jax.ShapeDtypeStruct((B, Sq, D), jnp.bfloat16),
        grid_spec=pltpu.PrefetchScalarGridSpec(
            num_scalar_prefetch=0,
            grid=(B, Sq // tq, Skv // tkv),
            in_specs=in_specs,
            out_specs=pl.BlockSpec((1, tq, D), lambda b, qi, ki: (b, qi, 0)),
            scratch_shapes=[
                pltpu.VMEM((h, tq, 1), jnp.float32),   # running max per head
                pltpu.VMEM((h, tq, 1), jnp.float32),   # running denom per head
                pltpu.VMEM((tq, D), jnp.float32),      # head-concatenated acc
            ],
        ),
        compiler_params=pltpu.CompilerParams(
            dimension_semantics=("parallel", "parallel", "arbitrary"),
            vmem_limit_bytes=_vmem_limit_bytes(),
        ),
    )(*inputs)


def _attention_fused(qkv, bias, h, d_k, D, *, tq=256, tkv=512):
    """qkv: (B, S, 3D) bf16 fused projection; Q/K/V picked by lane offsets."""
    B, S, _ = qkv.shape
    tq = _fit_tile(S, tq, 8)
    tkv = _fit_tile(S, tkv, 128)
    if D % 128 == 0:
        # lane-dense path: the BlockSpec last-axis block index selects Q/K/V,
        # so only the needed D lanes are DMA'd per block.
        specs = (pl.BlockSpec((1, tq, D), lambda b, qi, ki: (b, qi, 0)),
                 pl.BlockSpec((1, tkv, D), lambda b, qi, ki: (b, ki, 1)),
                 pl.BlockSpec((1, tkv, D), lambda b, qi, ki: (b, ki, 2)))
        offs = (0, 0, 0)
    else:
        # small-d_model fallback: whole (.., 3D) lane slab per block; Q/K/V are
        # selected by static lane offsets in-kernel (still no XLA slice copies).
        specs = (pl.BlockSpec((1, tq, 3 * D), lambda b, qi, ki: (b, qi, 0)),
                 pl.BlockSpec((1, tkv, 3 * D), lambda b, qi, ki: (b, ki, 0)),
                 pl.BlockSpec((1, tkv, 3 * D), lambda b, qi, ki: (b, ki, 0)))
        offs = (0, D, 2 * D)
    return _run_attention((qkv, qkv, qkv), specs, offs, bias, h, d_k, D,
                          B, S, S, tq, tkv)


def _attention_separate(q, k, v, bias, h, d_k, D, *, tq=256, tkv=512):
    """q: (B, Sq, D), k/v: (B, Skv, D), all bf16."""
    B, Sq, _ = q.shape
    Skv = k.shape[1]
    tq = _fit_tile(Sq, tq, 8)
    tkv = _fit_tile(Skv, tkv, 128)
    specs = (pl.BlockSpec((1, tq, D), lambda b, qi, ki: (b, qi, 0)),
             pl.BlockSpec((1, tkv, D), lambda b, qi, ki: (b, ki, 0)),
             pl.BlockSpec((1, tkv, D), lambda b, qi, ki: (b, ki, 0)))
    return _run_attention((q, k, v), specs, (0, 0, 0), bias, h, d_k, D,
                          B, Sq, Skv, tq, tkv)


# ---------------------------------------------------------------------------
# MultiHeadedAttention forward
# ---------------------------------------------------------------------------
def multi_headed_attention(params, query, key, value, mask=None):
    """
    query/key/value: (B, S, d_model) float32
    mask: None, (S, S), (1, S, S), (B, S, S) or (B, 1, S, S); zeros are masked out.
    params: kernel weights, bf16, pre-transposed, 1/sqrt(d_k) folded into Q proj.
    """
    B, S, D = query.shape
    h = params["h"]
    d_k = D // h

    # additive attention bias (bf16); skipped entirely when there is no mask
    bias = None
    if mask is not None:
        m = jnp.asarray(mask)
        if m.ndim == 2:
            m = m[None]
        elif m.ndim == 4:        # torch-style (B, 1, S, S)
            m = m[:, 0]
        bias = jnp.where(m == 0, -1e9, 0.0).astype(jnp.bfloat16)

    if (query is key) and (key is value):
        # self-attention fast path: fused QKV projection, bf16 activations,
        # fed directly into the attention kernel (no wrapper slicing).
        qkv = pallas_linear(query.reshape(B * S, D), params["Wqkv_t"],
                            params["bqkv"], out_dtype=jnp.bfloat16)
        ctx = _attention_fused(qkv.reshape(B, S, 3 * D), bias, h, d_k, D)
    else:
        q2 = pallas_linear(query.reshape(B * S, D), params["Wq_t"], params["bq"],
                           out_dtype=jnp.bfloat16).reshape(B, S, D)
        k2 = pallas_linear(key.reshape(-1, D), params["Wk_t"], params["bk"],
                           out_dtype=jnp.bfloat16).reshape(key.shape[0], key.shape[1], D)
        v2 = pallas_linear(value.reshape(-1, D), params["Wv_t"], params["bv"],
                           out_dtype=jnp.bfloat16).reshape(value.shape[0], value.shape[1], D)
        ctx = _attention_separate(q2, k2, v2, bias, h, d_k, D)

    out = pallas_linear(ctx.reshape(B * S, D), params["Wo_t"], params["bo"],
                        out_dtype=jnp.float32)
    return out.reshape(B, S, D)


# ---------------------------------------------------------------------------
# Pure-JAX f32 reference (mirrors the PyTorch module, unscaled f32 weights)
# ---------------------------------------------------------------------------
def _reference(params, query, key, value, mask):
    B, S, D = query.shape
    h = params["h"]
    d_k = D // h

    def proj(x, wt, b):
        y = x.reshape(-1, D) @ wt + b
        return y.reshape(x.shape[0], x.shape[1], h, d_k).transpose(0, 2, 1, 3)

    q = proj(query, params["Wq_t"], params["bq"])
    k = proj(key, params["Wk_t"], params["bk"])
    v = proj(value, params["Wv_t"], params["bv"])
    scores = jnp.einsum("bhqd,bhkd->bhqk", q, k) / math.sqrt(d_k)
    if mask is not None:
        m = jnp.asarray(mask)
        if m.ndim == 2:
            m = m[None, None]
        elif m.ndim == 3:
            m = m[:, None]
        scores = jnp.where(m == 0, -1e9, scores)
    p = jax.nn.softmax(scores, axis=-1)
    x = jnp.einsum("bhqk,bhkd->bhqd", p, v)
    x = x.transpose(0, 2, 1, 3).reshape(B * S, D)
    return (x @ params["Wo_t"] + params["bo"]).reshape(B, S, D)


if __name__ == "__main__":
    # Small shapes: batch=2, seq=8, d_model=32, heads=4 (d_k=8).
    B, S, D, H = 2, 8, 32, 4
    d_k = D // H
    scale = 1.0 / math.sqrt(d_k)

    key0 = jax.random.PRNGKey(0)
    ks = jax.random.split(key0, 12)
    bound = 1.0 / math.sqrt(D)

    def init_w(k):
        return jax.random.uniform(k, (D, D), jnp.float32, -bound, bound)

    def init_b(k):
        return jax.random.uniform(k, (D,), jnp.float32, -bound, bound)

    Wq, bq = init_w(ks[0]), init_b(ks[1])
    Wk, bk = init_w(ks[2]), init_b(ks[3])
    Wv, bv = init_w(ks[4]), init_b(ks[5])
    Wo, bo = init_w(ks[6]), init_b(ks[7])

    # Kernel weights: bf16, pre-transposed once, 1/sqrt(d_k) folded into Q proj.
    params = {
        "h": H,
        "Wq_t": (Wq.T * scale).astype(jnp.bfloat16), "bq": bq * scale,
        "Wk_t": Wk.T.astype(jnp.bfloat16), "bk": bk,
        "Wv_t": Wv.T.astype(jnp.bfloat16), "bv": bv,
        "Wo_t": Wo.T.astype(jnp.bfloat16), "bo": bo,
        "Wqkv_t": jnp.concatenate([Wq.T * scale, Wk.T, Wv.T], axis=1).astype(jnp.bfloat16),
        "bqkv": jnp.concatenate([bq * scale, bk, bv]),
    }
    # Reference uses unscaled f32 weights (scale applied explicitly to scores).
    ref_params = {
        "h": H,
        "Wq_t": Wq.T, "bq": bq, "Wk_t": Wk.T, "bk": bk,
        "Wv_t": Wv.T, "bv": bv, "Wo_t": Wo.T, "bo": bo,
    }

    x_self = jax.random.normal(ks[8], (B, S, D), jnp.float32)
    mask = jnp.tril(jnp.ones((S, S), jnp.float32))   # batch-invariant causal mask

    # 1) self-attention (fused QKV path) with a causal mask
    out = multi_headed_attention(params, x_self, x_self, x_self, mask)
    out = jax.block_until_ready(out)
    ref = _reference(ref_params, x_self, x_self, x_self, mask)
    assert out.shape == (B, S, D)
    # bf16 weights/activations on the MXU -> loosened tolerance vs f32 reference
    assert jnp.allclose(out, ref, atol=5e-2, rtol=5e-2), "self-attn mismatch vs reference"

    # 2) cross-attention (separate Q/K/V projections), no mask -> no bias input
    q_in = jax.random.normal(ks[9], (B, S, D), jnp.float32)
    k_in = jax.random.normal(ks[10], (B, S, D), jnp.float32)
    v_in = jax.random.normal(ks[11], (B, S, D), jnp.float32)
    out2 = jax.block_until_ready(multi_headed_attention(params, q_in, k_in, v_in, None))
    ref2 = _reference(ref_params, q_in, k_in, v_in, None)
    assert jnp.allclose(out2, ref2, atol=5e-2, rtol=5e-2), "cross-attn mismatch vs reference"

    print("KERNEL_OK")
</pallas_src>

<mosaic_0001>
module attributes {stable_mosaic.version = 11 : i64} {
  func.func @_linear_kernel_acc(%arg0: i32, %arg1: i32, %arg2: i32, %arg3: memref<16x32xf32, #tpu.memory_space<vmem>>, %arg4: memref<32x96xbf16, #tpu.memory_space<vmem>>, %arg5: memref<1x96xf32, #tpu.memory_space<vmem>>, %arg6: memref<16x96xbf16, #tpu.memory_space<vmem>>, %arg7: memref<16x96xf32, #tpu.memory_space<vmem>>) attributes {dimension_semantics = [#tpu.dimension_semantics<parallel>, #tpu.dimension_semantics<parallel>, #tpu.dimension_semantics<arbitrary>], iteration_bounds = array<i64: 1, 1, 1>, scalar_prefetch = 0 : i64, scratch_operands = 1 : i64, tpu.core_type = #tpu.core_type<tc>, window_params = [{transform_indices = @transform_0, window_bounds = array<i64: 16, 32>}, {transform_indices = @transform_1, window_bounds = array<i64: 32, 96>}, {transform_indices = @transform_2, window_bounds = array<i64: 1, 96>}, {transform_indices = @transform_3, window_bounds = array<i64: 16, 96>}]} {
    %c0_i32 = arith.constant 0 : i32
    %0 = arith.cmpi eq, %arg2, %c0_i32 : i32
    %1 = arith.extui %0 : i1 to i32
    %c0_i32_0 = arith.constant 0 : i32
    %2 = arith.cmpi ne, %1, %c0_i32_0 : i32
    scf.if %2 {
      %cst_10 = arith.constant 0.000000e+00 : f32
      %13 = vector.broadcast %cst_10 : f32 to vector<16x96xf32>
      %c0_11 = arith.constant 0 : index
      %c0_12 = arith.constant 0 : index
      %14 = vector.load %arg7[%c0_11, %c0_12] : memref<16x96xf32, #tpu.memory_space<vmem>>, vector<16x96xf32>
      tpu.vector_store %arg7[%c0_11, %c0_12], %13 {strides = array<i32>} : memref<16x96xf32, #tpu.memory_space<vmem>>, vector<16x96xf32>,
    } else {
    }
    %c0 = arith.constant 0 : index
    %c0_1 = arith.constant 0 : index
    %3 = vector.load %arg3[%c0, %c0_1] : memref<16x32xf32, #tpu.memory_space<vmem>>, vector<16x32xf32>
    %4 = arith.truncf %3 : vector<16x32xf32> to vector<16x32xbf16>
    %c0_2 = arith.constant 0 : index
    %c0_3 = arith.constant 0 : index
    %5 = vector.load %arg4[%c0_2, %c0_3] : memref<32x96xbf16, #tpu.memory_space<vmem>>, vector<32x96xbf16>
    %c0_4 = arith.constant 0 : index
    %c0_5 = arith.constant 0 : index
    %6 = vector.load %arg7[%c0_4, %c0_5] : memref<16x96xf32, #tpu.memory_space<vmem>>, vector<16x96xf32>
    %cst = arith.constant dense<0.000000e+00> : vector<16x96xf32>
    %7 = tpu.matmul %4, %5, %cst {dimension_numbers = #tpu.dot_dimension_numbers<[1], [0], [0], [1], [0, 0, 1, 1], [], []>} : vector<16x32xbf16>, vector<32x96xbf16>, vector<16x96xf32> -> vector<16x96xf32>
    %8 = arith.addf %6, %7 : vector<16x96xf32>
    %c0_6 = arith.constant 0 : index
    %c0_7 = arith.constant 0 : index
    %9 = vector.load %arg7[%c0_6, %c0_7] : memref<16x96xf32, #tpu.memory_space<vmem>>, vector<16x96xf32>
    tpu.vector_store %arg7[%c0_6, %c0_7], %8 {strides = array<i32>} : memref<16x96xf32, #tpu.memory_space<vmem>>, vector<16x96xf32>,
    %c0_i32_8 = arith.constant 0 : i32
    %10 = arith.cmpi eq, %arg2, %c0_i32_8 : i32
    %11 = arith.extui %10 : i1 to i32
    %c0_i32_9 = arith.constant 0 : i32
    %12 = arith.cmpi ne, %11, %c0_i32_9 : i32
    scf.if %12 {
      %c0_10 = arith.constant 0 : index
      %c0_11 = arith.constant 0 : index
      %13 = vector.load %arg7[%c0_10, %c0_11] : memref<16x96xf32, #tpu.memory_space<vmem>>, vector<16x96xf32>
      %c0_12 = arith.constant 0 : index
      %c0_13 = arith.constant 0 : index
      %14 = vector.load %arg5[%c0_12, %c0_13] : memref<1x96xf32, #tpu.memory_space<vmem>>, vector<1x96xf32>
      %15 = vector.broadcast %14 : vector<1x96xf32> to vector<16x96xf32>
      %16 = arith.addf %13, %15 : vector<16x96xf32>
      %17 = arith.truncf %16 : vector<16x96xf32> to vector<16x96xbf16>
      %c0_14 = arith.constant 0 : index
      %c0_15 = arith.constant 0 : index
      %18 = vector.load %arg6[%c0_14, %c0_15] : memref<16x96xbf16, #tpu.memory_space<vmem>>, vector<16x96xbf16>
      tpu.vector_store %arg6[%c0_14, %c0_15], %17 {strides = array<i32>} : memref<16x96xbf16, #tpu.memory_space<vmem>>, vector<16x96xbf16>,
    } else {
    }
    return
  }
  func.func @transform_0(%arg0: i32, %arg1: i32, %arg2: i32) -> (i32, i32) {
    %c0_i32 = arith.constant 0 : i32
    return %arg0, %arg2 : i32, i32
  }
  func.func @transform_1(%arg0: i32, %arg1: i32, %arg2: i32) -> (i32, i32) {
    %c0_i32 = arith.constant 0 : i32
    return %arg2, %arg1 : i32, i32
  }
  func.func @transform_2(%arg0: i32, %arg1: i32, %arg2: i32) -> (i32, i32) {
    %c0_i32 = arith.constant 0 : i32
    %c0_i32_0 = arith.constant 0 : i32
    return %c0_i32, %arg1 : i32, i32
  }
  func.func @transform_3(%arg0: i32, %arg1: i32, %arg2: i32) -> (i32, i32) {
    %c0_i32 = arith.constant 0 : i32
    return %arg0, %arg1 : i32, i32
  }
}

</mosaic_0001>

<llo_original>
// kernel: tpu_custom_call.1
$region0: #{tpu_custom_call.1}
  #allocation0 [shape = 'u32[]', space=smem, size = 0x4, offset = 0x4, fixed_abs, tag = 'smem constant byte address 0x4 - core index']
  #allocation1 [shape = 'u32[144,128]{1,0:T(1,128)}', space=vmem, size = 0x12000, scoped, tag = 'internal scratch']
  #allocation2 [shape = 'f32[16,96]{1,0:T(8,128)}', space=vmem, size = 0x2000, scoped, tag = 'scratch operand']
  %s0 = inlined_call_operand.hbm [shape: f32[16,32], index: 0, kind: input, shape index: {}]
  %s1 = inlined_call_operand.hbm [shape: bf16[32,96], index: 1, kind: input, shape index: {}]
  %s2 = inlined_call_operand.hbm [shape: f32[1,96], index: 2, kind: input, shape index: {}]
  %s3 = inlined_call_operand.hbm [shape: bf16[16,96], index: 3, kind: output, shape index: {}]
  %s4 = sld [smem:[#allocation0]]
  $region42: #{tpu_custom_call.1} parent=0
    _
  %s6 = ssub.s32 1, %s4
  %s7 = scalar_select 0, %s6, %s4
  $region1: #{tpu_custom_call.1} parent=0
    #allocation3 [shape = 'u8[8192]{0}', space=vmem, size = 0x2000, scoped, tag = 'input window, operand 0, single buffered']
    #allocation4 [shape = 's32[1]{0}', space=sflag, size = 0x4, scoped, tag = 'scoped memory for tpu_custom_call.1']
    #allocation5 [shape = 's32[1]{0}', space=sflag, size = 0x4, scoped, tag = 'scoped memory for tpu_custom_call.1']
    #allocation6 [shape = 'u8[8192]{0}', space=vmem, size = 0x2000, scoped, tag = 'input window, operand 1, single buffered']
    #allocation7 [shape = 's32[1]{0}', space=sflag, size = 0x4, scoped, tag = 'scoped memory for tpu_custom_call.1']
    #allocation8 [shape = 'u8[512]{0}', space=vmem, size = 0x400, scoped, tag = 'input window, operand 2, single buffered']
    #allocation9 [shape = 'u8[4096]{0}', space=vmem, size = 0x1000, scoped, tag = 'output window, operand 0, single buffered']
    %8 = vsyncpa [#allocation4], 0
    %9 = vsyncpa [#allocation7], 0
    %10 = vsyncpa [#allocation5], 0
    // Predicated region
    $region2: #{tpu_custom_call.1} parent=1 // pred_check
      _
    $region3: #{tpu_custom_call.1} parent=1 // pred_check_branch
      %12 = sbr.rel (0) target = $region5
    $region4: #{tpu_custom_call.1} parent=1 // pred_region
      %s14 = ssub.s32 256, 256
      %15 = vsyncadd [#allocation4], %s14
      %s16 = sshll.u32 [#allocation3], 4
      %s17 = int_to_ptr.vmem [resolvable:$true] %s16
      %22 = dma.hbm_to_vmem [thread:$0]  %s0, 256, %s17, [#allocation4], 128, 128, 8
    $region5: #{tpu_custom_call.1} parent=1 // pred_fallthru
      _
    // Predicated region
    $region6: #{tpu_custom_call.1} parent=1 // pred_check
      _
    $region7: #{tpu_custom_call.1} parent=1 // pred_check_branch
      %24 = sbr.rel (0) target = $region9
    $region8: #{tpu_custom_call.1} parent=1 // pred_region
      %s26 = ssub.s32 256, 256
      %27 = vsyncadd [#allocation7], %s26
      %s28 = sshll.u32 [#allocation6], 4
      %s29 = int_to_ptr.vmem [resolvable:$true] %s28
      %34 = dma.hbm_to_vmem [thread:$0]  %s1, 256, %s29, [#allocation7], 64, 64, 4
    $region9: #{tpu_custom_call.1} parent=1 // pred_fallthru
      _
    // Predicated region
    $region10: #{tpu_custom_call.1} parent=1 // pred_check
      _
    $region11: #{tpu_custom_call.1} parent=1 // pred_check_branch
      %36 = sbr.rel (0) target = $region13
    $region12: #{tpu_custom_call.1} parent=1 // pred_region
      %s38 = ssub.s32 16, 16
      %39 = vsyncadd [#allocation7], %s38
      %s41 = sshll.u32 [#allocation8], 4
      %s42 = int_to_ptr.vmem [resolvable:$true] %s41
      %44 = dma.hbm_to_vmem [thread:$0]  %s2, 16, %s42, [#allocation7]
    $region13: #{tpu_custom_call.1} parent=1 // pred_fallthru
      _
    // Predicated region
    $region14: #{tpu_custom_call.1} parent=1 // pred_check
      _
    $region15: #{tpu_custom_call.1} parent=1 // pred_check_branch
      %46 = sbr.rel (0) target = $region17
    $region16: #{tpu_custom_call.1} parent=1 // pred_region
      %47 = dma.done [#allocation4], 256
    $region17: #{tpu_custom_call.1} parent=1 // pred_fallthru
      _
    // Predicated region
    $region18: #{tpu_custom_call.1} parent=1 // pred_check
      _
    $region19: #{tpu_custom_call.1} parent=1 // pred_check_branch
      %49 = sbr.rel (0) target = $region21
    $region20: #{tpu_custom_call.1} parent=1 // pred_region
      %50 = dma.done [#allocation7], 256
    $region21: #{tpu_custom_call.1} parent=1 // pred_fallthru
      _
    // Predicated region
    $region22: #{tpu_custom_call.1} parent=1 // pred_check
      _
    $region23: #{tpu_custom_call.1} parent=1 // pred_check_branch
      %52 = sbr.rel (0) target = $region25
    $region24: #{tpu_custom_call.1} parent=1 // pred_region
      %53 = dma.done [#allocation7], 16
    $region25: #{tpu_custom_call.1} parent=1 // pred_fallthru
      _
    %p55 = scmp.eq.s32.totalorder 0, 0
    // Predicated region
    $region26: #{tpu_custom_call.1} parent=1 // pred_check
      %p56 = pneg %p55
    $region27: #{tpu_custom_call.1} parent=1 // pred_check_branch
      %58 = sbr.rel (%p56) target = $region29
    $region28: #{tpu_custom_call.1} parent=1 // pred_region
      %vm59 = vcmask 785408
      %60 = vst.msk [vmem:[#allocation2] sm:$0xff] %vm59, 0.0
      %61 = vst.msk [vmem:[#allocation2 + $0x8] sm:$0xff] %vm59, 0.0
    $region29: #{tpu_custom_call.1} parent=1 // pred_fallthru
      _
    %v62 = vld [vmem:[#allocation3] sm:$0xff]
    %v63 = vld [vmem:[#allocation3 + $0x8] sm:$0xff]
    %v64 = vpack.c.bf16 %v63, %v62
    %v65 = vld [vmem:[#allocation6] sm:$0xf]
    %v66 = vld [vmem:[#allocation6 + $0x4] sm:$0xf]
    %v67 = vld [vmem:[#allocation6 + $0x8] sm:$0xf]
    %v68 = vld [vmem:[#allocation6 + $0xc] sm:$0xf]
    %v69 = vld [vmem:[#allocation2] sm:$0xff]
    %v70 = vld [vmem:[#allocation2 + $0x8] sm:$0xff]
    %v75 = vunpack.c.l.b16 %v65
    %v76 = vunpack.c.l.b16 %v66
    %v77 = vunpack.c.l.b16 %v67
    %v78 = vunpack.c.l.b16 %v68
    %v79 = vpack.c.b16 %v76, %v75
    %v80 = vpack.c.b16 %v78, %v77
    %vm83 = vcmask 261120
    %v85 = vsel %vm83, %v64, 0
    %87 = vmatprep.subr.bf16.mxu0 0
    %88 = vmatpush1.bf16.msra.mxu0 %v79
    %89 = vmatprep.subr.bf16.mxu0 0
    %90 = vmatpush1.bf16.msra.mxu0 %v80
    %91 = vmatprep.subr.bf16.mxu0 0
    %92 = vmatpush1.bf16.msra.mxu0 0
    %93 = vmatprep.subr.bf16.mxu0 0
    %94 = vmatpush1.bf16.msra.mxu0 0
    %95 = vmatprep.subr.bf16.mxu0 0
    %96 = vmatpush1.bf16.msra.mxu0 0
    %97 = vmatprep.subr.bf16.mxu0 0
    %98 = vmatpush1.bf16.msra.mxu0 0
    %99 = vmatprep.subr.bf16.mxu0 0
    %100 = vmatpush1.bf16.msra.mxu0 0
    %101 = vmatprep.subr.bf16.mxu0 0
    %102 = vmatpush1.bf16.msra.mxu0 0
    %103 = vmatprep.subr.bf16.mxu0 0
    %104 = vmatpush1.bf16.msra.mxu0 0
    %105 = vmatprep.subr.bf16.mxu0 0
    %106 = vmatpush1.bf16.msra.mxu0 0
    %107 = vmatprep.subr.bf16.mxu0 0
    %108 = vmatpush1.bf16.msra.mxu0 0
    %109 = vmatprep.subr.bf16.mxu0 0
    %110 = vmatpush1.bf16.msra.mxu0 0
    %111 = vmatprep.subr.bf16.mxu0 0
    %112 = vmatpush1.bf16.msra.mxu0 0
    %113 = vmatprep.subr.bf16.mxu0 0
    %114 = vmatpush1.bf16.msra.mxu0 0
    %115 = vmatprep.subr.bf16.mxu0 0
    %116 = vmatpush1.bf16.msra.mxu0 0
    %117 = vmatprep.subr.bf16.mxu0 0
    %118 = vmatpush1.bf16.msra.mxu0 0
    %119 = vmatprep.mubr.bf16.mxu0 0
    %120 = vmatmul.mubr.bf16.gmra.mrb[0].mxu0 %v85
    %v121 = vpop.f32.mrb[0].mxu0
    %v122 = vadd.f32 0.0, %v121
    %v123 = vpop.f32.mrb[0].mxu0
    %v124 = vpop.f32.mrb[0].mxu0
    %v125 = vadd.f32 0.0, %v124
    %v126 = vpop.f32.mrb[0].mxu0
    %127 = vdwg.mxu0
    %v128 = vadd.f32 %v69, %v122
    %v129 = vadd.f32 %v70, %v125
    %vm130 = vcmask 785408
    %131 = vst.msk [vmem:[#allocation2] sm:$0xff] %vm130, %v128
    %132 = vst.msk [vmem:[#allocation2 + $0x8] sm:$0xff] %vm130, %v129
    // Predicated region
    $region30: #{tpu_custom_call.1} parent=1 // pred_check
      %p133 = pneg %p55
    $region31: #{tpu_custom_call.1} parent=1 // pred_check_branch
      %135 = sbr.rel (%p133) target = $region33
    $region32: #{tpu_custom_call.1} parent=1 // pred_region
      %v136 = vld [vmem:[#allocation2] sm:$0xff]
      %v137 = vld [vmem:[#allocation2 + $0x8] sm:$0xff]
      %v138 = vld [vmem:[#allocation8] sm:$0x1]
      %v140 = vlaneseq
      %v141 = vshrl.u32 %v140, 7
      %v142 = vsub.s32 0, %v141
      %v143 = vrot.slane %v138, %v142
      %v145 = vadd.f32 %v136, %v143
      %v146 = vadd.f32 %v137, %v143
      %v147 = vpack.c.bf16 %v146, %v145
      %v149 = vunpack.c.l.b16 %v147
      %v150 = vunpack.c.h.b16 %v147
      %v151 = vpack.c.b16 %v149, %v149
      %v152 = vpack.c.b16 %v150, %v150
      %vm155 = vcmask 781312
      %156 = vst.msk [vmem:[#allocation9] sm:$0xf] %vm155, %v151
      %157 = vst.msk [vmem:[#allocation9 + $0x4] sm:$0xf] %vm155, %v152
    $region33: #{tpu_custom_call.1} parent=1 // pred_fallthru
      _
    // Predicated region
    $region34: #{tpu_custom_call.1} parent=1 // pred_check
      _
    $region35: #{tpu_custom_call.1} parent=1 // pred_check_branch
      %159 = sbr.rel (0) target = $region37
    $region36: #{tpu_custom_call.1} parent=1 // pred_region
      %s161 = ssub.s32 128, 128
      %162 = vsyncadd [#allocation5], %s161
      %s163 = sshll.u32 [#allocation9], 4
      %s164 = int_to_ptr.vmem [resolvable:$true] %s163
      %169 = dma.vmem_to_hbm [thread:$0]  %s164, 128, %s3, [#allocation5], 64, 64, 4
    $region37: #{tpu_custom_call.1} parent=1 // pred_fallthru
      _
    // Predicated region
    $region38: #{tpu_custom_call.1} parent=1 // pred_check
      _
    $region39: #{tpu_custom_call.1} parent=1 // pred_check_branch
      %171 = sbr.rel (0) target = $region41
    $region40: #{tpu_custom_call.1} parent=1 // pred_region
      %172 = dma.done [#allocation5], 128
    $region41: #{tpu_custom_call.1} parent=1 // pred_fallthru
      _
    %173 = vsyncpa [#allocation4], 1
    %174 = vsyncpa [#allocation7], 1
    %175 = vsyncpa [#allocation5], 1

</llo_original>
